<compile_context>
chip_gen: v7x
topology: tpu7x:2x2x1
jax: 0.10.0
libtpu: 0.0.40
codegen_flags: <defaults>
</compile_context>

<pallas_src>
import functools

import jax
import jax.numpy as jnp
from jax.experimental import pallas as pl
from jax.experimental.pallas import tpu as pltpu

ATT_W = 3  # attention_width (default of forward())


def _attention_kernel(x2_ref, wbig_ref, pbig_ref, o_ref, *, att_w, h):
    """Single-invocation kernel over the whole (small) sequence.

    x2_ref  : (T, B*H)   inputs, lane-dense (batch-blocked along lanes)
    wbig_ref: (B*H, B*H) kron(I_B, W)        -> batched tanh(x@W) in ONE matmul
    pbig_ref: (B*H, B*H) kron(I_B, proj·1^T) -> per-(t,b) logit broadcast to
                                                its H lanes in ONE full-width matmul
    o_ref   : (T, B*H)   FULL output: rows [0, att_w) are pass-through copies
                          of the input, rows [att_w, T) are attention outputs.
    """
    t_total = o_ref.shape[0]
    n_out = t_total - att_w

    x2 = x2_ref[...]                                                 # (T, BH)

    # Hoisted pre-pass: per-timestep scores computed ONCE for all windows
    # (adjacent windows overlap by att_w-1 rows), as lane-dense MXU matmuls.
    u2 = jnp.tanh(jnp.dot(x2, wbig_ref[...],
                          preferred_element_type=jnp.float32))       # (T, BH)

    # Projection fused with the per-batch-block broadcast:
    # l2[t, b*H + h] == logits[t, b] for every h (no N=1 matmul, no reshape).
    l2 = jnp.dot(u2, pbig_ref[...],
                 preferred_element_type=jnp.float32)                 # (T, BH)

    # Legacy nn.Softmax() implicit dim=1 on the (W, B) scores == softmax over
    # the BATCH axis per window slot.  Each batch logit is replicated on its H
    # lanes, so the full-lane max is the batch max and the full-lane sum is
    # H * (batch sum).
    m2 = jnp.max(l2, axis=-1, keepdims=True)                         # (T, 1)
    e2 = jnp.exp(l2 - m2)                                            # (T, BH)
    s2 = jnp.sum(e2, axis=-1, keepdims=True)                         # (T, 1) = H * denom
    a2 = e2 * (float(h) * pl.reciprocal(s2, approx=True))            # (T, BH)

    w2 = a2 * x2                                                     # weighted inputs

    # out[i] = sum_{t=i-att_w}^{i-1} w2[t]   for i in [att_w, T)
    # (W=3: three sublane-shifted adds; switch to a prefix-sum for large W.)
    acc = jnp.zeros((n_out, x2.shape[1]), jnp.float32)
    for k in range(att_w):                                           # static, unrolled
        acc = acc + w2[k:k + n_out]

    # Full-output write inside the kernel: no wrapper-side concat, no extra
    # HBM round trip of the result.
    o_ref[:att_w, :] = x2[:att_w]                                    # pass-through rows
    o_ref[att_w:, :] = acc                                           # attention rows


def prepare_attention_weights(weight_W, weight_proj, batch_size, dtype=jnp.float32):
    """Build the block-diagonal weight expansions ONCE (at weight-load time).

    Returns
      w_big: (B*H, B*H) = kron(I_B, W)
      p_big: (B*H, B*H) = kron(I_B, proj · 1^T)
    so the per-(t, b) math inside the kernel is two lane-dense matmuls with
    zero in-kernel relayout.  Reused across every forward call.
    """
    h = weight_W.shape[0]
    eye_b = jnp.eye(batch_size, dtype=dtype)
    w_big = jnp.kron(eye_b, weight_W.astype(dtype))                              # (BH, BH)
    p_big = jnp.kron(eye_b, jnp.broadcast_to(weight_proj.astype(dtype), (h, h)))  # (BH, BH)
    return w_big, p_big


@functools.partial(jax.jit, static_argnames=("attention_width",))
def attention_layer_forward(inputs, w_big, p_big, *, attention_width=ATT_W):
    """inputs: (T, B, H) f32; w_big/p_big from prepare_attention_weights -> (T, B, H)."""
    T, B, H = inputs.shape
    W = attention_width
    if T - W <= 0:
        return inputs                       # every timestep is a pass-through

    BH = B * H
    x2 = inputs.reshape(T, BH)              # lane-dense: last dim = B*H (=128 here)

    kernel = functools.partial(_attention_kernel, att_w=W, h=H)
    vmem = pltpu.MemorySpace.VMEM

    out2 = pl.pallas_call(
        kernel,
        out_shape=jax.ShapeDtypeStruct((T, BH), jnp.float32),
        # No grid: single invocation, whole arrays resident in VMEM, therefore
        # no (useless) double-buffering of the grid-invariant weight blocks.
        in_specs=[
            pl.BlockSpec(memory_space=vmem),
            pl.BlockSpec(memory_space=vmem),
            pl.BlockSpec(memory_space=vmem),
        ],
        out_specs=pl.BlockSpec(memory_space=vmem),
    )(x2, w_big, p_big)

    return out2.reshape(T, B, H)


def reference_forward(inputs, weight_W, weight_proj, attention_width=ATT_W):
    """Pure-JAX reference mirroring the (fixed) PyTorch semantics."""
    T, B, H = inputs.shape
    outs = []
    for i in range(T):
        if i < attention_width:
            outs.append(inputs[i])
        else:
            vec = inputs[i - attention_width:i]                          # (W, B, H)
            u = jnp.tanh(jnp.einsum("wbh,hk->wbk", vec, weight_W))       # (W, B, H)
            logits = jnp.einsum("wbk,ko->wbo", u, weight_proj)[..., 0]   # (W, B)
            a = jax.nn.softmax(logits, axis=1)                           # legacy dim=1 (batch)
            outs.append(jnp.sum(a[:, :, None] * vec, axis=0))            # (B, H)
    return jnp.stack(outs, axis=0)


if __name__ == "__main__":
    key = jax.random.PRNGKey(0)
    k_in, k_w, k_p = jax.random.split(key, 3)

    T, B, H = 8, 4, 32  # seq=8, batch=4, layer_size=32  (B*H = 128 lanes)
    inputs = jax.random.normal(k_in, (T, B, H), dtype=jnp.float32)
    weight_W = jax.random.uniform(k_w, (H, H), jnp.float32, minval=-0.3, maxval=0.3)
    weight_proj = jax.random.uniform(k_p, (H, 1), jnp.float32, minval=-0.3, maxval=0.3)
    bias = jnp.zeros((H,), jnp.float32)  # declared by the module, unused in forward()

    # Weight-load-time preparation (done ONCE, reused every forward call).
    w_big, p_big = prepare_attention_weights(weight_W, weight_proj, B)
    w_big, p_big = jax.block_until_ready((w_big, p_big))

    out = attention_layer_forward(inputs, w_big, p_big, attention_width=ATT_W)
    out = jax.block_until_ready(out)

    ref = reference_forward(inputs, weight_W, weight_proj, ATT_W)
    assert out.shape == (T, B, H)
    err = jnp.max(jnp.abs(out - ref))
    # Tolerance covers pl.reciprocal(approx=True) and default MXU matmul precision.
    if not jnp.allclose(out, ref, rtol=2e-2, atol=2e-2):
        raise AssertionError(f"mismatch: max abs err = {err}")

    print("KERNEL_OK")
</pallas_src>

<mosaic_0001>
module attributes {stable_mosaic.version = 11 : i64} {
  func.func @_attention_kernel(%arg0: memref<8x128xf32, #tpu.memory_space<vmem>>, %arg1: memref<128x128xf32, #tpu.memory_space<vmem>>, %arg2: memref<128x128xf32, #tpu.memory_space<vmem>>, %arg3: memref<8x128xf32, #tpu.memory_space<vmem>>) attributes {dimension_semantics = [], scalar_prefetch = 0 : i64, scratch_operands = 0 : i64, tpu.core_type = #tpu.core_type<tc>} {
    %c0 = arith.constant 0 : index
    %c0_0 = arith.constant 0 : index
    %0 = vector.load %arg0[%c0, %c0_0] : memref<8x128xf32, #tpu.memory_space<vmem>>, vector<8x128xf32>
    %c0_1 = arith.constant 0 : index
    %c0_2 = arith.constant 0 : index
    %1 = vector.load %arg1[%c0_1, %c0_2] : memref<128x128xf32, #tpu.memory_space<vmem>>, vector<128x128xf32>
    %cst = arith.constant dense<0.000000e+00> : vector<8x128xf32>
    %2 = tpu.matmul %0, %1, %cst {dimension_numbers = #tpu.dot_dimension_numbers<[1], [0], [0], [1], [0, 0, 1, 1], [], []>} : vector<8x128xf32>, vector<128x128xf32>, vector<8x128xf32> -> vector<8x128xf32>
    %3 = math.tanh %2 : vector<8x128xf32>
    %c0_3 = arith.constant 0 : index
    %c0_4 = arith.constant 0 : index
    %4 = vector.load %arg2[%c0_3, %c0_4] : memref<128x128xf32, #tpu.memory_space<vmem>>, vector<128x128xf32>
    %cst_5 = arith.constant dense<0.000000e+00> : vector<8x128xf32>
    %5 = tpu.matmul %3, %4, %cst_5 {dimension_numbers = #tpu.dot_dimension_numbers<[1], [0], [0], [1], [0, 0, 1, 1], [], []>} : vector<8x128xf32>, vector<128x128xf32>, vector<8x128xf32> -> vector<8x128xf32>
    %cst_6 = arith.constant dense<0xFF800000> : vector<8xf32>
    %6 = vector.multi_reduction <maximumf>, %5, %cst_6 [1] : vector<8x128xf32> to vector<8xf32>
    %7 = vector.shape_cast %6 : vector<8xf32> to vector<8x1xf32>
    %8 = vector.broadcast %7 : vector<8x1xf32> to vector<8x128xf32>
    %9 = arith.subf %5, %8 : vector<8x128xf32>
    %10 = math.exp %9 : vector<8x128xf32>
    %cst_7 = arith.constant dense<0.000000e+00> : vector<8xf32>
    %11 = vector.multi_reduction <add>, %10, %cst_7 [1] : vector<8x128xf32> to vector<8xf32>
    %12 = vector.shape_cast %11 : vector<8xf32> to vector<8x1xf32>
    %13 = tpu.reciprocal %12 {approx = true} : vector<8x1xf32> -> vector<8x1xf32>
    %cst_8 = arith.constant 3.200000e+01 : f32
    %14 = vector.broadcast %cst_8 : f32 to vector<8x1xf32>
    %15 = arith.mulf %14, %13 : vector<8x1xf32>
    %16 = vector.broadcast %15 : vector<8x1xf32> to vector<8x128xf32>
    %17 = arith.mulf %10, %16 : vector<8x128xf32>
    %18 = arith.mulf %17, %0 : vector<8x128xf32>
    %cst_9 = arith.constant 0.000000e+00 : f32
    %19 = vector.broadcast %cst_9 : f32 to vector<5x128xf32>
    %20 = vector.extract_strided_slice %18 {offsets = [0, 0], sizes = [5, 128], strides = [1, 1]} : vector<8x128xf32> to vector<5x128xf32>
    %21 = arith.addf %19, %20 : vector<5x128xf32>
    %22 = vector.extract_strided_slice %18 {offsets = [1, 0], sizes = [5, 128], strides = [1, 1]} : vector<8x128xf32> to vector<5x128xf32>
    %23 = arith.addf %21, %22 : vector<5x128xf32>
    %24 = vector.extract_strided_slice %18 {offsets = [2, 0], sizes = [5, 128], strides = [1, 1]} : vector<8x128xf32> to vector<5x128xf32>
    %25 = arith.addf %23, %24 : vector<5x128xf32>
    %26 = vector.extract_strided_slice %0 {offsets = [0, 0], sizes = [3, 128], strides = [1, 1]} : vector<8x128xf32> to vector<3x128xf32>
    %c0_10 = arith.constant 0 : index
    %c0_11 = arith.constant 0 : index
    %27 = vector.load %arg3[%c0_10, %c0_11] : memref<8x128xf32, #tpu.memory_space<vmem>>, vector<3x128xf32>
    tpu.vector_store %arg3[%c0_10, %c0_11], %26 {strides = array<i32>} : memref<8x128xf32, #tpu.memory_space<vmem>>, vector<3x128xf32>,
    %c3 = arith.constant 3 : index
    %c0_12 = arith.constant 0 : index
    %28 = vector.load %arg3[%c3, %c0_12] : memref<8x128xf32, #tpu.memory_space<vmem>>, vector<5x128xf32>
    tpu.vector_store %arg3[%c3, %c0_12], %25 {strides = array<i32>} : memref<8x128xf32, #tpu.memory_space<vmem>>, vector<5x128xf32>,
    return
  }
}

</mosaic_0001>

<llo_original>
// kernel: attention_layer_forward.1
$region0: #{attention_layer_forward.1}
  #allocation0 [shape = 'u32[]', space=smem, size = 0x4, offset = 0x4, fixed_abs, tag = 'smem constant byte address 0x4 - core index']
  #allocation1 [shape = 'u32[144,128]{1,0:T(1,128)}', space=vmem, size = 0x12000, scoped, tag = 'internal scratch']
  %s0 = inlined_call_operand.vmem [shape: f32[8,128], index: 0, kind: input, shape index: {}]
  %s1 = inlined_call_operand.hbm [shape: f32[128,128], index: 1, kind: input, shape index: {}]
  %s2 = inlined_call_operand.hbm [shape: f32[128,128], index: 2, kind: input, shape index: {}]
  %s3 = inlined_call_operand.vmem [shape: f32[8,128], index: 3, kind: output, shape index: {}]
  %s4 = sld [smem:[#allocation0]]
  $region30: #{attention_layer_forward.1} parent=0
    _
  %s6 = ssub.s32 1, %s4
  %s7 = scalar_select 0, %s6, %s4
  $region1: #{attention_layer_forward.1} parent=0
    #allocation2 [shape = 'u8[65536]{0}', space=vmem, size = 0x10000, scoped, tag = 'input window, operand 1, single buffered']
    #allocation3 [shape = 's32[1]{0}', space=sflag, size = 0x4, scoped, tag = 'scoped memory for attention_layer_forward.1']
    #allocation4 [shape = 'u8[65536]{0}', space=vmem, size = 0x10000, scoped, tag = 'input window, operand 2, single buffered']
    #allocation5 [shape = 's32[1]{0}', space=sflag, size = 0x4, scoped, tag = 'scoped memory for attention_layer_forward.1']
    %8 = vsyncpa [#allocation3], 0
    %9 = vsyncpa [#allocation5], 0
    // Predicated region
    $region2: #{attention_layer_forward.1} parent=1 // pred_check
      _
    $region3: #{attention_layer_forward.1} parent=1 // pred_check_branch
      %11 = sbr.rel (0) target = $region5
    $region4: #{attention_layer_forward.1} parent=1 // pred_region
      _
    $region5: #{attention_layer_forward.1} parent=1 // pred_fallthru
      _
    // Predicated region
    $region6: #{attention_layer_forward.1} parent=1 // pred_check
      _
    $region7: #{attention_layer_forward.1} parent=1 // pred_check_branch
      %13 = sbr.rel (0) target = $region9
    $region8: #{attention_layer_forward.1} parent=1 // pred_region
      %s15 = ssub.s32 2048, 2048
      %16 = vsyncadd [#allocation3], %s15
      %s17 = sshll.u32 [#allocation2], 4
      %s18 = int_to_ptr.vmem [resolvable:$true] %s17
      %23 = dma.hbm_to_vmem [thread:$0]  %s1, 2048, %s18, [#allocation3], 128, 128, 8
    $region9: #{attention_layer_forward.1} parent=1 // pred_fallthru
      _
    // Predicated region
    $region10: #{attention_layer_forward.1} parent=1 // pred_check
      _
    $region11: #{attention_layer_forward.1} parent=1 // pred_check_branch
      %25 = sbr.rel (0) target = $region13
    $region12: #{attention_layer_forward.1} parent=1 // pred_region
      %s27 = ssub.s32 2048, 2048
      %28 = vsyncadd [#allocation5], %s27
      %s29 = sshll.u32 [#allocation4], 4
      %s30 = int_to_ptr.vmem [resolvable:$true] %s29
      %35 = dma.hbm_to_vmem [thread:$0]  %s2, 2048, %s30, [#allocation5], 128, 128, 8
    $region13: #{attention_layer_forward.1} parent=1 // pred_fallthru
      _
    // Predicated region
    $region14: #{attention_layer_forward.1} parent=1 // pred_check
      _
    $region15: #{attention_layer_forward.1} parent=1 // pred_check_branch
      %37 = sbr.rel (0) target = $region17
    $region16: #{attention_layer_forward.1} parent=1 // pred_region
      %38 = dma.done [#allocation3], 2048
    $region17: #{attention_layer_forward.1} parent=1 // pred_fallthru
      _
    // Predicated region
    $region18: #{attention_layer_forward.1} parent=1 // pred_check
      _
    $region19: #{attention_layer_forward.1} parent=1 // pred_check_branch
      %40 = sbr.rel (0) target = $region21
    $region20: #{attention_layer_forward.1} parent=1 // pred_region
      %41 = dma.done [#allocation5], 2048
    $region21: #{attention_layer_forward.1} parent=1 // pred_fallthru
      _
    %v42 = vld [vmem:[%s0] sm:$0xff]
    %v43 = vld [vmem:[#allocation2] sm:$0xff]
    %v44 = vld [vmem:[#allocation2 + $0x8] sm:$0xff]
    %v45 = vld [vmem:[#allocation2 + $0x10] sm:$0xff]
    %v46 = vld [vmem:[#allocation2 + $0x18] sm:$0xff]
    %v47 = vld [vmem:[#allocation2 + $0x20] sm:$0xff]
    %v48 = vld [vmem:[#allocation2 + $0x28] sm:$0xff]
    %v49 = vld [vmem:[#allocation2 + $0x30] sm:$0xff]
    %v50 = vld [vmem:[#allocation2 + $0x38] sm:$0xff]
    %v51 = vld [vmem:[#allocation2 + $0x40] sm:$0xff]
    %v52 = vld [vmem:[#allocation2 + $0x48] sm:$0xff]
    %v53 = vld [vmem:[#allocation2 + $0x50] sm:$0xff]
    %v54 = vld [vmem:[#allocation2 + $0x58] sm:$0xff]
    %v55 = vld [vmem:[#allocation2 + $0x60] sm:$0xff]
    %v56 = vld [vmem:[#allocation2 + $0x68] sm:$0xff]
    %v57 = vld [vmem:[#allocation2 + $0x70] sm:$0xff]
    %v58 = vld [vmem:[#allocation2 + $0x78] sm:$0xff]
    %59 = vmatprep.subr.mxu0 0.0
    %60 = vmatpush1.msra.mxu0 %v43
    %61 = vmatprep.subr.mxu0 0.0
    %62 = vmatpush1.msra.mxu0 %v44
    %63 = vmatprep.subr.mxu0 0.0
    %64 = vmatpush1.msra.mxu0 %v45
    %65 = vmatprep.subr.mxu0 0.0
    %66 = vmatpush1.msra.mxu0 %v46
    %67 = vmatprep.subr.mxu0 0.0
    %68 = vmatpush1.msra.mxu0 %v47
    %69 = vmatprep.subr.mxu0 0.0
    %70 = vmatpush1.msra.mxu0 %v48
    %71 = vmatprep.subr.mxu0 0.0
    %72 = vmatpush1.msra.mxu0 %v49
    %73 = vmatprep.subr.mxu0 0.0
    %74 = vmatpush1.msra.mxu0 %v50
    %75 = vmatprep.subr.mxu0 0.0
    %76 = vmatpush1.msra.mxu0 %v51
    %77 = vmatprep.subr.mxu0 0.0
    %78 = vmatpush1.msra.mxu0 %v52
    %79 = vmatprep.subr.mxu0 0.0
    %80 = vmatpush1.msra.mxu0 %v53
    %81 = vmatprep.subr.mxu0 0.0
    %82 = vmatpush1.msra.mxu0 %v54
    %83 = vmatprep.subr.mxu0 0.0
    %84 = vmatpush1.msra.mxu0 %v55
    %85 = vmatprep.subr.mxu0 0.0
    %86 = vmatpush1.msra.mxu0 %v56
    %87 = vmatprep.subr.mxu0 0.0
    %88 = vmatpush1.msra.mxu0 %v57
    %89 = vmatprep.subr.mxu0 0.0
    %90 = vmatpush1.msra.mxu0 %v58
    %91 = vmatprep.subr.mxu0 0.0
    %92 = vmatpush1.msra.mxu0 0.0
    %93 = vmatprep.subr.mxu0 0.0
    %94 = vmatpush1.msra.mxu0 0.0
    %95 = vmatprep.subr.mxu0 0.0
    %96 = vmatpush1.msra.mxu0 0.0
    %97 = vmatprep.subr.mxu0 0.0
    %98 = vmatpush1.msra.mxu0 0.0
    %99 = vmatprep.subr.mxu0 0.0
    %100 = vmatpush1.msra.mxu0 0.0
    %101 = vmatprep.subr.mxu0 0.0
    %102 = vmatpush1.msra.mxu0 0.0
    %103 = vmatprep.subr.mxu0 0.0
    %104 = vmatpush1.msra.mxu0 0.0
    %105 = vmatprep.subr.mxu0 0.0
    %106 = vmatpush1.msra.mxu0 0.0
    %107 = vmatprep.subr.mxu0 0.0
    %108 = vmatpush1.msra.mxu0 0.0
    %109 = vmatprep.subr.mxu0 0.0
    %110 = vmatpush1.msra.mxu0 0.0
    %111 = vmatprep.subr.mxu0 0.0
    %112 = vmatpush1.msra.mxu0 0.0
    %113 = vmatprep.subr.mxu0 0.0
    %114 = vmatpush1.msra.mxu0 0.0
    %115 = vmatprep.subr.mxu0 0.0
    %116 = vmatpush1.msra.mxu0 0.0
    %117 = vmatprep.subr.mxu0 0.0
    %118 = vmatpush1.msra.mxu0 0.0
    %119 = vmatprep.subr.mxu0 0.0
    %120 = vmatpush1.msra.mxu0 0.0
    %121 = vmatprep.subr.mxu0 0.0
    %122 = vmatpush1.msra.mxu0 0.0
    %123 = vmatprep.mubr.f32.mxu0 0.0
    %124 = vmatmul.mubr.f32.gmra.mrb[0].mxu0 %v42
    %v125 = vpop.f32.mrb[0].mxu0
    %v126 = vadd.f32 0.0, %v125
    %v127 = vpop.f32.mrb[0].mxu0
    %128 = vdwg.mxu0
    %v129 = vtanh.pop %v126
    %v130 = vld [vmem:[#allocation4] sm:$0xff]
    %v131 = vld [vmem:[#allocation4 + $0x8] sm:$0xff]
    %v132 = vld [vmem:[#allocation4 + $0x10] sm:$0xff]
    %v133 = vld [vmem:[#allocation4 + $0x18] sm:$0xff]
    %v134 = vld [vmem:[#allocation4 + $0x20] sm:$0xff]
    %v135 = vld [vmem:[#allocation4 + $0x28] sm:$0xff]
    %v136 = vld [vmem:[#allocation4 + $0x30] sm:$0xff]
    %v137 = vld [vmem:[#allocation4 + $0x38] sm:$0xff]
    %v138 = vld [vmem:[#allocation4 + $0x40] sm:$0xff]
    %v139 = vld [vmem:[#allocation4 + $0x48] sm:$0xff]
    %v140 = vld [vmem:[#allocation4 + $0x50] sm:$0xff]
    %v141 = vld [vmem:[#allocation4 + $0x58] sm:$0xff]
    %v142 = vld [vmem:[#allocation4 + $0x60] sm:$0xff]
    %v143 = vld [vmem:[#allocation4 + $0x68] sm:$0xff]
    %v144 = vld [vmem:[#allocation4 + $0x70] sm:$0xff]
    %v145 = vld [vmem:[#allocation4 + $0x78] sm:$0xff]
    %146 = vmatprep.subr.mxu0 0.0
    %147 = vmatpush1.msra.mxu0 %v130
    %148 = vmatprep.subr.mxu0 0.0
    %149 = vmatpush1.msra.mxu0 %v131
    %150 = vmatprep.subr.mxu0 0.0
    %151 = vmatpush1.msra.mxu0 %v132
    %152 = vmatprep.subr.mxu0 0.0
    %153 = vmatpush1.msra.mxu0 %v133
    %154 = vmatprep.subr.mxu0 0.0
    %155 = vmatpush1.msra.mxu0 %v134
    %156 = vmatprep.subr.mxu0 0.0
    %157 = vmatpush1.msra.mxu0 %v135
    %158 = vmatprep.subr.mxu0 0.0
    %159 = vmatpush1.msra.mxu0 %v136
    %160 = vmatprep.subr.mxu0 0.0
    %161 = vmatpush1.msra.mxu0 %v137
    %162 = vmatprep.subr.mxu0 0.0
    %163 = vmatpush1.msra.mxu0 %v138
    %164 = vmatprep.subr.mxu0 0.0
    %165 = vmatpush1.msra.mxu0 %v139
    %166 = vmatprep.subr.mxu0 0.0
    %167 = vmatpush1.msra.mxu0 %v140
    %168 = vmatprep.subr.mxu0 0.0
    %169 = vmatpush1.msra.mxu0 %v141
    %170 = vmatprep.subr.mxu0 0.0
    %171 = vmatpush1.msra.mxu0 %v142
    %172 = vmatprep.subr.mxu0 0.0
    %173 = vmatpush1.msra.mxu0 %v143
    %174 = vmatprep.subr.mxu0 0.0
    %175 = vmatpush1.msra.mxu0 %v144
    %176 = vmatprep.subr.mxu0 0.0
    %177 = vmatpush1.msra.mxu0 %v145
    %178 = vmatprep.subr.mxu0 0.0
    %179 = vmatpush1.msra.mxu0 0.0
    %180 = vmatprep.subr.mxu0 0.0
    %181 = vmatpush1.msra.mxu0 0.0
    %182 = vmatprep.subr.mxu0 0.0
    %183 = vmatpush1.msra.mxu0 0.0
    %184 = vmatprep.subr.mxu0 0.0
    %185 = vmatpush1.msra.mxu0 0.0
    %186 = vmatprep.subr.mxu0 0.0
    %187 = vmatpush1.msra.mxu0 0.0
    %188 = vmatprep.subr.mxu0 0.0
    %189 = vmatpush1.msra.mxu0 0.0
    %190 = vmatprep.subr.mxu0 0.0
    %191 = vmatpush1.msra.mxu0 0.0
    %192 = vmatprep.subr.mxu0 0.0
    %193 = vmatpush1.msra.mxu0 0.0
    %194 = vmatprep.subr.mxu0 0.0
    %195 = vmatpush1.msra.mxu0 0.0
    %196 = vmatprep.subr.mxu0 0.0
    %197 = vmatpush1.msra.mxu0 0.0
    %198 = vmatprep.subr.mxu0 0.0
    %199 = vmatpush1.msra.mxu0 0.0
    %200 = vmatprep.subr.mxu0 0.0
    %201 = vmatpush1.msra.mxu0 0.0
    %202 = vmatprep.subr.mxu0 0.0
    %203 = vmatpush1.msra.mxu0 0.0
    %204 = vmatprep.subr.mxu0 0.0
    %205 = vmatpush1.msra.mxu0 0.0
    %206 = vmatprep.subr.mxu0 0.0
    %207 = vmatpush1.msra.mxu0 0.0
    %208 = vmatprep.subr.mxu0 0.0
    %209 = vmatpush1.msra.mxu0 0.0
    %210 = vmatprep.mubr.f32.mxu0 0.0
    %211 = vmatmul.mubr.f32.gmra.mrb[0].mxu0 %v129
    %v212 = vpop.f32.mrb[0].mxu0
    %v213 = vadd.f32 0.0, %v212
    %v214 = vpop.f32.mrb[0].mxu0
    %215 = vdwg.mxu0
    %216 = vmax.xlane.f32.xlu0 %v213
    %v217 = vpop.xlane.xlu0 %216
    %v218 = vsub.f32 %v213, %v217
    %v219 = vmul.f32 %v218, 1.442695
    %v220 = vpow.pop %v219
    %221 = vadd.xlane.f32.xlu0 %v220
    %v222 = vpop.xlane.xlu0 %221
    %v223 = vrcp.pop %v222
    %v224 = vmul.f32 %v223, 32.0
    %v225 = vmul.f32 %v220, %v224
    %v226 = vmul.f32 %v225, %v42
    %v227 = vadd.f32 %v226, 0.0
    %v229 = vrot.slane %v226, 1
    %v231 = vadd.f32 %v227, %v229
    %v232 = vrot.slane %v226, 2
    %v234 = vadd.f32 %v231, %v232
    %235 = vst [vmem:[%s3] sm:$0x7] %v42
    %236 = vst [vmem:[%s3 + $0x3] sm:$0x1f] %v234
    // Predicated region
    $region22: #{attention_layer_forward.1} parent=1 // pred_check
      _
    $region23: #{attention_layer_forward.1} parent=1 // pred_check_branch
      %238 = sbr.rel (0) target = $region25
    $region24: #{attention_layer_forward.1} parent=1 // pred_region
      _
    $region25: #{attention_layer_forward.1} parent=1 // pred_fallthru
      _
    // Predicated region
    $region26: #{attention_layer_forward.1} parent=1 // pred_check
      _
    $region27: #{attention_layer_forward.1} parent=1 // pred_check_branch
      %240 = sbr.rel (0) target = $region29
    $region28: #{attention_layer_forward.1} parent=1 // pred_region
      _
    $region29: #{attention_layer_forward.1} parent=1 // pred_fallthru
      _
    %241 = vsyncpa [#allocation3], 1
    %242 = vsyncpa [#allocation5], 1

</llo_original>
